<compile_context>
chip_gen: v5e
topology: v5e:2x2
jax: 0.10.0
libtpu: 0.0.40
codegen_flags: <defaults>
</compile_context>

<pallas_src>
import math

import jax
import jax.numpy as jnp
from jax.experimental import pallas as pl
from jax.experimental.pallas import tpu as pltpu

K_W = 5            # conv2d kernel width along the char dimension (kernel_size=(1,5))
NUM_HIGHWAY = 2    # HighwayEncoder(2, hidden_size)
LANE = 128


def _round_up(x, m):
    return (x + m - 1) // m * m


def _embedding_kernel(cols_ref, wd_ref, w2_ref, b2_ref, w1c_ref, w1w_ref,
                      whw_ref, bhw_ref, out_ref):
    # cols_ref: (TM, W, Kp)        bf16  wrapper-side im2col (W >= c_out window slots,
    #                                    extra slots duplicate the last valid window,
    #                                    K padded 80 -> 128 with zeros)
    # wd_ref  : (TM, P1)           f32   raw word embeddings (cast to bf16 in VMEM)
    # w2_ref  : (Kp, Hp)           bf16  im2col-flattened conv2d weight (zero-padded rows)
    # b2_ref  : (1, Hp)            f32   conv2d bias
    # w1c_ref : (Hp, Hp)           bf16  1x1 conv1d weight, char-feature input rows
    # w1w_ref : (P1, Hp)           bf16  1x1 conv1d weight, word input rows
    # whw_ref : (2, Hp, 2*Hp)      bf16  per-layer fused [gate | transform] weights
    # bhw_ref : (2, 1, 2*Hp)       f32   per-layer fused [gate | transform] biases
    # out_ref : (TM, Hp)
    TM, W, Kp = cols_ref.shape
    Hp = out_ref.shape[-1]

    # ---- Conv2d(P2 -> Hp, kernel (1,5), bias) + ReLU + max over char windows ----
    # Single MXU pass; reshape (TM, W, Kp) -> (TM*W, Kp) is a no-op relayout since
    # W is a multiple of 8 and Kp a multiple of 128.
    y = jnp.dot(cols_ref[...].reshape(TM * W, Kp), w2_ref[...],
                preferred_element_type=jnp.float32)            # (TM*W, Hp) f32
    y = y.reshape(TM, W, Hp)
    # Duplicate window slots make max over W == max over the valid c_out windows.
    # relu is monotone and the bias is constant over the window index, so
    # max_c relu(y_c + b) == relu(max_c y_c + b): bias + relu hoisted out of the max.
    ch_feat = jax.nn.relu(jnp.max(y, axis=1) + b2_ref[...])    # (TM, Hp) f32

    # ---- 1x1 Conv1d on concat([char_feat, word]) == two accumulated dots ----
    x = jnp.dot(ch_feat.astype(jnp.bfloat16), w1c_ref[...],
                preferred_element_type=jnp.float32)
    x = x + jnp.dot(wd_ref[...].astype(jnp.bfloat16), w1w_ref[...],
                    preferred_element_type=jnp.float32)        # (TM, Hp) f32

    # ---- 2-layer highway network (dropout = identity in eval mode) ----
    for i in range(NUM_HIGHWAY):
        gt = jnp.dot(x.astype(jnp.bfloat16), whw_ref[i],
                     preferred_element_type=jnp.float32) + bhw_ref[i]   # (TM, 2*Hp)
        g = jax.nn.sigmoid(gt[:, :Hp])      # lane-aligned halves (Hp % 128 == 0)
        t = jax.nn.relu(gt[:, Hp:])
        x = g * t + (1.0 - g) * x

    out_ref[...] = x.astype(out_ref.dtype)


def pack_params(params):
    """One-time packing of module parameters into the kernel's padded bf16 layout.

    Hoisted out of the forward path (perf review): call once at init, reuse.
    Hidden dim is zero-padded to a multiple of 128 lanes; padded columns stay
    exactly zero through the whole network and are sliced off in the wrapper.
    """
    H = params["b2"].shape[-1]
    P2 = params["w2"].shape[1]
    K = K_W * P2
    Hp = _round_up(H, LANE)
    Kp = _round_up(K, LANE)
    dh = Hp - H
    w1 = params["w1"]                                   # (H + P1, H); rows: [char | word]
    return {
        "w2": jnp.pad(params["w2"].reshape(K, H),
                      ((0, Kp - K), (0, dh))).astype(jnp.bfloat16),          # (Kp, Hp)
        "b2": jnp.pad(params["b2"], ((0, 0), (0, dh))).astype(jnp.float32),  # (1, Hp)
        "w1c": jnp.pad(w1[:H], ((0, dh), (0, dh))).astype(jnp.bfloat16),     # (Hp, Hp)
        "w1w": jnp.pad(w1[H:], ((0, 0), (0, dh))).astype(jnp.bfloat16),      # (P1, Hp)
        "whw": jnp.concatenate(
            [jnp.pad(params["wg"], ((0, 0), (0, dh), (0, dh))),
             jnp.pad(params["wt"], ((0, 0), (0, dh), (0, dh)))],
            axis=-1).astype(jnp.bfloat16),                                   # (2, Hp, 2Hp)
        "bhw": jnp.concatenate(
            [jnp.pad(params["bg"], ((0, 0), (0, dh))),
             jnp.pad(params["bt"], ((0, 0), (0, dh)))],
            axis=-1)[:, None, :].astype(jnp.float32),                        # (2, 1, 2Hp)
    }


def qanet_embedding(ch_emb, wd_emb, packed, *, hidden_size,
                    out_dtype=jnp.float32, transpose_out=True, tm=512):
    """ch_emb: (B, L, C, P2) f32, wd_emb: (B, L, P1) f32, packed = pack_params(...).

    Returns (B, H, L) (PyTorch layout) by default; pass transpose_out=False to get
    (B, L, H) and skip the extra HBM pass, and out_dtype=jnp.bfloat16 to halve the
    output writeback (production settings).
    """
    B, L, C, P2 = ch_emb.shape
    _, _, P1 = wd_emb.shape
    H = hidden_size
    Kp, Hp = packed["w2"].shape
    assert C >= K_W, "char length must be >= conv kernel width"
    c_out = C - K_W + 1
    W = _round_up(c_out, 8)            # sublane-aligned window-slot count
    rows = B * L

    # ---- wrapper-side im2col (perf review: keep layout work out of the kernel;
    # the bf16 cast fuses into the gather write, so no separate cast HBM pass).
    # Window slots >= c_out duplicate the last valid window -> max-invariant.
    starts = jnp.minimum(jnp.arange(W), c_out - 1)               # (W,)
    idx = starts[:, None] + jnp.arange(K_W)[None, :]             # (W, K_W), all < C
    cols = ch_emb.reshape(rows, C, P2)[:, idx, :]                # (rows, W, K_W, P2)
    cols = cols.reshape(rows, W, K_W * P2).astype(jnp.bfloat16)
    cols = jnp.pad(cols, ((0, 0), (0, 0), (0, Kp - K_W * P2)))   # lane-dense K (80->128)
    wd2 = wd_emb.reshape(rows, P1)                               # raw f32, cast in VMEM

    # ---- row tiling: big TM amortizes per-step overhead; for tiny inputs shrink
    # TM so the grid has >= 2 steps (lets "parallel" shard across v7x's two TCs).
    TM = min(tm, _round_up(rows, 8))
    if _round_up(rows, TM) // TM < 2 and TM > 8:
        TM = max(8, _round_up((rows + 1) // 2, 8))
    rows_p = _round_up(rows, TM)
    if rows_p != rows:
        cols = jnp.pad(cols, ((0, rows_p - rows), (0, 0), (0, 0)))
        wd2 = jnp.pad(wd2, ((0, rows_p - rows), (0, 0)))

    out = pl.pallas_call(
        _embedding_kernel,
        out_shape=jax.ShapeDtypeStruct((rows_p, Hp), out_dtype),
        grid=(rows_p // TM,),
        in_specs=[
            pl.BlockSpec((TM, W, Kp), lambda r: (r, 0, 0)),      # im2col char windows (bf16)
            pl.BlockSpec((TM, P1), lambda r: (r, 0)),            # word embeddings (f32)
            # Weights below are grid-invariant; on v7x (64 MiB VMEM) they could be
            # single-buffered via pipeline_mode=pl.Buffered(1) — tiny here, left default.
            pl.BlockSpec((Kp, Hp), lambda r: (0, 0)),            # conv2d weight (im2col)
            pl.BlockSpec((1, Hp), lambda r: (0, 0)),             # conv2d bias
            pl.BlockSpec((Hp, Hp), lambda r: (0, 0)),            # 1x1 conv: char rows
            pl.BlockSpec((P1, Hp), lambda r: (0, 0)),            # 1x1 conv: word rows
            pl.BlockSpec((NUM_HIGHWAY, Hp, 2 * Hp), lambda r: (0, 0, 0)),  # highway weights
            pl.BlockSpec((NUM_HIGHWAY, 1, 2 * Hp), lambda r: (0, 0, 0)),   # highway biases
        ],
        out_specs=pl.BlockSpec((TM, Hp), lambda r: (r, 0)),
        compiler_params=pltpu.CompilerParams(
            dimension_semantics=("parallel",),
            # ~12 MiB peak at TM=512 (im2col double-buffer + f32 y slab): fits the
            # 32 MiB scoped default on all generations. Raise toward 64 MiB only
            # when sweeping TM to 1024 on v5e/v6e; re-derive TM against 64 MiB
            # physical VMEM on v7x.
            vmem_limit_bytes=32 * 1024 * 1024,
        ),
    )(cols, wd2, packed["w2"], packed["b2"], packed["w1c"], packed["w1w"],
      packed["whw"], packed["bhw"])

    out = out[:rows, :H].reshape(B, L, H)
    if transpose_out:
        # Match the PyTorch module's (B, H, L) return layout. Consumers that can
        # take (B, L, H) should pass transpose_out=False to avoid this HBM pass.
        out = jnp.transpose(out, (0, 2, 1))
    return out


def init_params(key, p1, p2, hidden):
    """Deterministic synthetic parameters matching the PyTorch module's shapes/inits."""
    ks = jax.random.split(key, 7)
    # conv2d: weight (H, p2, 1, 5) kaiming-normal, bias (H,) default uniform
    std = math.sqrt(2.0 / (p2 * K_W))
    w2d = jax.random.normal(ks[0], (hidden, p2, 1, K_W), jnp.float32) * std
    bnd = 1.0 / math.sqrt(p2 * K_W)
    b2d = jax.random.uniform(ks[1], (hidden,), jnp.float32, -bnd, bnd)
    # conv1d: weight (H, p1 + H, 1), xavier-uniform, no bias
    lim = math.sqrt(6.0 / ((p1 + hidden) + hidden))
    w1d = jax.random.uniform(ks[2], (hidden, p1 + hidden, 1), jnp.float32, -lim, lim)
    # highway Linear layers: default PyTorch init, uniform(-1/sqrt(H), 1/sqrt(H))
    lb = 1.0 / math.sqrt(hidden)
    wg = jax.random.uniform(ks[3], (NUM_HIGHWAY, hidden, hidden), jnp.float32, -lb, lb)
    bg = jax.random.uniform(ks[4], (NUM_HIGHWAY, hidden), jnp.float32, -lb, lb)
    wt = jax.random.uniform(ks[5], (NUM_HIGHWAY, hidden, hidden), jnp.float32, -lb, lb)
    bt = jax.random.uniform(ks[6], (NUM_HIGHWAY, hidden), jnp.float32, -lb, lb)
    # Repack (un-padded) into the layouts pack_params expects:
    #   w2[k, p, h] = conv2d_weight[h, p, 0, k];  w1 = conv1d_weight[:, :, 0].T
    #   linear weights pre-transposed so the kernel computes x @ W.T as x @ w
    return {
        "w2": jnp.transpose(w2d[:, :, 0, :], (2, 1, 0)),     # (K_W, p2, H)
        "b2": b2d.reshape(1, hidden),                        # (1, H)
        "w1": jnp.transpose(w1d[:, :, 0], (1, 0)),           # (H + p1, H)
        "wg": jnp.transpose(wg, (0, 2, 1)),                  # (2, H, H)
        "bg": bg,                                            # (2, H)
        "wt": jnp.transpose(wt, (0, 2, 1)),                  # (2, H, H)
        "bt": bt,                                            # (2, H)
    }


def reference(ch_emb, wd_emb, P):
    """Pure-JAX reference with identical math. MXU operands are rounded to bf16
    (matching the kernel); accumulation and elementwise math stay f32."""
    def r(x):
        return x.astype(jnp.bfloat16).astype(jnp.float32)

    B, L, C, p2 = ch_emb.shape
    H = P["b2"].shape[-1]
    c_out = C - K_W + 1
    ch = r(ch_emb)
    w2 = r(P["w2"])
    acc = jnp.zeros((B, L, c_out, H), jnp.float32)
    for k in range(K_W):
        acc = acc + jnp.einsum("blcp,ph->blch", ch[:, :, k:k + c_out, :], w2[k])
    ch_feat = jax.nn.relu(jnp.max(acc, axis=2) + P["b2"][0])             # (B, L, H)
    w1 = r(P["w1"])
    x = r(ch_feat) @ w1[:H] + r(wd_emb) @ w1[H:]                         # (B, L, H)
    for i in range(NUM_HIGHWAY):
        g = jax.nn.sigmoid(r(x) @ r(P["wg"][i]) + P["bg"][i])
        t = jax.nn.relu(r(x) @ r(P["wt"][i]) + P["bt"][i])
        x = g * t + (1.0 - g) * x
    return jnp.transpose(x, (0, 2, 1))                                   # (B, H, L)


if __name__ == "__main__":
    key = jax.random.PRNGKey(0)
    # Small shapes: batch=2, seq_len=8, char_len=16 (fixed by module spec),
    # word-emb p1=48, char-emb p2=16, hidden_size=32.
    B, L, C, P1, P2, H = 2, 8, 16, 48, 16, 32
    k1, k2, k3 = jax.random.split(key, 3)
    ch_emb = jax.random.normal(k1, (B, L, C, P2), jnp.float32)
    wd_emb = jax.random.normal(k2, (B, L, P1), jnp.float32)
    params = init_params(k3, P1, P2, H)
    packed = pack_params(params)          # one-time packing (hoisted out of forward)

    fwd = jax.jit(qanet_embedding,
                  static_argnames=("hidden_size", "out_dtype", "transpose_out", "tm"))

    # Module-exact path: f32 output in the PyTorch (B, H, L) layout.
    out = fwd(ch_emb, wd_emb, packed, hidden_size=H)
    jax.block_until_ready(out)

    # Production fast path: bf16 output, no final transpose (exercise it compiles/runs).
    out_fast = fwd(ch_emb, wd_emb, packed, hidden_size=H,
                   out_dtype=jnp.bfloat16, transpose_out=False)
    jax.block_until_ready(out_fast)
    assert out_fast.shape == (B, L, H) and out_fast.dtype == jnp.bfloat16

    ref = reference(ch_emb, wd_emb, params)
    assert out.shape == (B, H, L), out.shape
    err = float(jnp.max(jnp.abs(out - ref)))
    assert jnp.allclose(out, ref, rtol=5e-3, atol=5e-3), err
    print("KERNEL_OK")
</pallas_src>

<mosaic_0001>
module attributes {stable_mosaic.version = 11 : i64} {
  func.func @_embedding_kernel(%arg0: i32, %arg1: memref<8x16x128xbf16, #tpu.memory_space<vmem>>, %arg2: memref<8x48xf32, #tpu.memory_space<vmem>>, %arg3: memref<128x128xbf16, #tpu.memory_space<vmem>>, %arg4: memref<1x128xf32, #tpu.memory_space<vmem>>, %arg5: memref<128x128xbf16, #tpu.memory_space<vmem>>, %arg6: memref<48x128xbf16, #tpu.memory_space<vmem>>, %arg7: memref<2x128x256xbf16, #tpu.memory_space<vmem>>, %arg8: memref<2x1x256xf32, #tpu.memory_space<vmem>>, %arg9: memref<8x128xf32, #tpu.memory_space<vmem>>) attributes {dimension_semantics = [#tpu.dimension_semantics<parallel>], iteration_bounds = array<i64: 2>, scalar_prefetch = 0 : i64, scratch_operands = 0 : i64, tpu.core_type = #tpu.core_type<tc>, window_params = [{transform_indices = @transform_0, window_bounds = array<i64: 8, 16, 128>}, {transform_indices = @transform_1, window_bounds = array<i64: 8, 48>}, {pipeline_mode = #tpu.pipeline_mode<synchronous>, transform_indices = @transform_2, window_bounds = array<i64: 128, 128>}, {pipeline_mode = #tpu.pipeline_mode<synchronous>, transform_indices = @transform_3, window_bounds = array<i64: 1, 128>}, {pipeline_mode = #tpu.pipeline_mode<synchronous>, transform_indices = @transform_4, window_bounds = array<i64: 128, 128>}, {pipeline_mode = #tpu.pipeline_mode<synchronous>, transform_indices = @transform_5, window_bounds = array<i64: 48, 128>}, {pipeline_mode = #tpu.pipeline_mode<synchronous>, transform_indices = @transform_6, window_bounds = array<i64: 2, 128, 256>}, {pipeline_mode = #tpu.pipeline_mode<synchronous>, transform_indices = @transform_7, window_bounds = array<i64: 2, 1, 256>}, {transform_indices = @transform_8, window_bounds = array<i64: 8, 128>}]} {
    %c0 = arith.constant 0 : index
    %c0_0 = arith.constant 0 : index
    %c0_1 = arith.constant 0 : index
    %0 = vector.load %arg1[%c0, %c0_0, %c0_1] : memref<8x16x128xbf16, #tpu.memory_space<vmem>>, vector<8x16x128xbf16>
    %1 = vector.shape_cast %0 : vector<8x16x128xbf16> to vector<128x128xbf16>
    %c0_2 = arith.constant 0 : index
    %c0_3 = arith.constant 0 : index
    %2 = vector.load %arg3[%c0_2, %c0_3] : memref<128x128xbf16, #tpu.memory_space<vmem>>, vector<128x128xbf16>
    %cst = arith.constant dense<0.000000e+00> : vector<128x128xf32>
    %3 = tpu.matmul %1, %2, %cst {dimension_numbers = #tpu.dot_dimension_numbers<[1], [0], [0], [1], [0, 0, 1, 1], [], []>} : vector<128x128xbf16>, vector<128x128xbf16>, vector<128x128xf32> -> vector<128x128xf32>
    %4 = vector.shape_cast %3 : vector<128x128xf32> to vector<8x16x128xf32>
    %cst_4 = arith.constant dense<0xFF800000> : vector<8x128xf32>
    %5 = vector.multi_reduction <maximumf>, %4, %cst_4 [1] : vector<8x16x128xf32> to vector<8x128xf32>
    %c0_5 = arith.constant 0 : index
    %c0_6 = arith.constant 0 : index
    %6 = vector.load %arg4[%c0_5, %c0_6] : memref<1x128xf32, #tpu.memory_space<vmem>>, vector<1x128xf32>
    %7 = vector.broadcast %6 : vector<1x128xf32> to vector<8x128xf32>
    %8 = arith.addf %5, %7 : vector<8x128xf32>
    %cst_7 = arith.constant 0.000000e+00 : f32
    %9 = vector.broadcast %cst_7 : f32 to vector<8x128xf32>
    %10 = arith.maximumf %8, %9 : vector<8x128xf32>
    %11 = arith.truncf %10 : vector<8x128xf32> to vector<8x128xbf16>
    %c0_8 = arith.constant 0 : index
    %c0_9 = arith.constant 0 : index
    %12 = vector.load %arg5[%c0_8, %c0_9] : memref<128x128xbf16, #tpu.memory_space<vmem>>, vector<128x128xbf16>
    %cst_10 = arith.constant dense<0.000000e+00> : vector<8x128xf32>
    %13 = tpu.matmul %11, %12, %cst_10 {dimension_numbers = #tpu.dot_dimension_numbers<[1], [0], [0], [1], [0, 0, 1, 1], [], []>} : vector<8x128xbf16>, vector<128x128xbf16>, vector<8x128xf32> -> vector<8x128xf32>
    %c0_11 = arith.constant 0 : index
    %c0_12 = arith.constant 0 : index
    %14 = vector.load %arg2[%c0_11, %c0_12] : memref<8x48xf32, #tpu.memory_space<vmem>>, vector<8x48xf32>
    %15 = arith.truncf %14 : vector<8x48xf32> to vector<8x48xbf16>
    %c0_13 = arith.constant 0 : index
    %c0_14 = arith.constant 0 : index
    %16 = vector.load %arg6[%c0_13, %c0_14] : memref<48x128xbf16, #tpu.memory_space<vmem>>, vector<48x128xbf16>
    %cst_15 = arith.constant dense<0.000000e+00> : vector<8x128xf32>
    %17 = tpu.matmul %15, %16, %cst_15 {dimension_numbers = #tpu.dot_dimension_numbers<[1], [0], [0], [1], [0, 0, 1, 1], [], []>} : vector<8x48xbf16>, vector<48x128xbf16>, vector<8x128xf32> -> vector<8x128xf32>
    %18 = arith.addf %13, %17 : vector<8x128xf32>
    %19 = arith.truncf %18 : vector<8x128xf32> to vector<8x128xbf16>
    %c0_16 = arith.constant 0 : index
    %c0_17 = arith.constant 0 : index
    %c0_18 = arith.constant 0 : index
    %20 = vector.load %arg7[%c0_16, %c0_17, %c0_18] : memref<2x128x256xbf16, #tpu.memory_space<vmem>>, vector<1x128x256xbf16>
    %21 = vector.shape_cast %20 : vector<1x128x256xbf16> to vector<128x256xbf16>
    %cst_19 = arith.constant dense<0.000000e+00> : vector<8x256xf32>
    %22 = tpu.matmul %19, %21, %cst_19 {dimension_numbers = #tpu.dot_dimension_numbers<[1], [0], [0], [1], [0, 0, 1, 1], [], []>} : vector<8x128xbf16>, vector<128x256xbf16>, vector<8x256xf32> -> vector<8x256xf32>
    %c0_20 = arith.constant 0 : index
    %c0_21 = arith.constant 0 : index
    %c0_22 = arith.constant 0 : index
    %23 = vector.load %arg8[%c0_20, %c0_21, %c0_22] : memref<2x1x256xf32, #tpu.memory_space<vmem>>, vector<1x1x256xf32>
    %24 = vector.shape_cast %23 : vector<1x1x256xf32> to vector<1x256xf32>
    %25 = vector.broadcast %24 : vector<1x256xf32> to vector<8x256xf32>
    %26 = arith.addf %22, %25 : vector<8x256xf32>
    %27 = vector.extract_strided_slice %26 {offsets = [0, 0], sizes = [8, 128], strides = [1, 1]} : vector<8x256xf32> to vector<8x128xf32>
    %28 = arith.negf %27 : vector<8x128xf32>
    %29 = math.exp %28 : vector<8x128xf32>
    %cst_23 = arith.constant 1.000000e+00 : f32
    %30 = vector.broadcast %cst_23 : f32 to vector<8x128xf32>
    %31 = arith.addf %30, %29 : vector<8x128xf32>
    %32 = arith.divf %30, %31 : vector<8x128xf32>
    %33 = vector.extract_strided_slice %26 {offsets = [0, 128], sizes = [8, 128], strides = [1, 1]} : vector<8x256xf32> to vector<8x128xf32>
    %cst_24 = arith.constant 0.000000e+00 : f32
    %34 = vector.broadcast %cst_24 : f32 to vector<8x128xf32>
    %35 = arith.maximumf %33, %34 : vector<8x128xf32>
    %36 = arith.mulf %32, %35 : vector<8x128xf32>
    %cst_25 = arith.constant 1.000000e+00 : f32
    %37 = vector.broadcast %cst_25 : f32 to vector<8x128xf32>
    %38 = arith.subf %37, %32 : vector<8x128xf32>
    %39 = arith.mulf %38, %18 : vector<8x128xf32>
    %40 = arith.addf %36, %39 : vector<8x128xf32>
    %41 = arith.truncf %40 : vector<8x128xf32> to vector<8x128xbf16>
    %c1 = arith.constant 1 : index
    %c0_26 = arith.constant 0 : index
    %c0_27 = arith.constant 0 : index
    %42 = vector.load %arg7[%c1, %c0_26, %c0_27] : memref<2x128x256xbf16, #tpu.memory_space<vmem>>, vector<1x128x256xbf16>
    %43 = vector.shape_cast %42 : vector<1x128x256xbf16> to vector<128x256xbf16>
    %cst_28 = arith.constant dense<0.000000e+00> : vector<8x256xf32>
    %44 = tpu.matmul %41, %43, %cst_28 {dimension_numbers = #tpu.dot_dimension_numbers<[1], [0], [0], [1], [0, 0, 1, 1], [], []>} : vector<8x128xbf16>, vector<128x256xbf16>, vector<8x256xf32> -> vector<8x256xf32>
    %c1_29 = arith.constant 1 : index
    %c0_30 = arith.constant 0 : index
    %c0_31 = arith.constant 0 : index
    %45 = vector.load %arg8[%c1_29, %c0_30, %c0_31] : memref<2x1x256xf32, #tpu.memory_space<vmem>>, vector<1x1x256xf32>
    %46 = vector.shape_cast %45 : vector<1x1x256xf32> to vector<1x256xf32>
    %47 = vector.broadcast %46 : vector<1x256xf32> to vector<8x256xf32>
    %48 = arith.addf %44, %47 : vector<8x256xf32>
    %49 = vector.extract_strided_slice %48 {offsets = [0, 0], sizes = [8, 128], strides = [1, 1]} : vector<8x256xf32> to vector<8x128xf32>
    %50 = arith.negf %49 : vector<8x128xf32>
    %51 = math.exp %50 : vector<8x128xf32>
    %cst_32 = arith.constant 1.000000e+00 : f32
    %52 = vector.broadcast %cst_32 : f32 to vector<8x128xf32>
    %53 = arith.addf %52, %51 : vector<8x128xf32>
    %54 = arith.divf %52, %53 : vector<8x128xf32>
    %55 = vector.extract_strided_slice %48 {offsets = [0, 128], sizes = [8, 128], strides = [1, 1]} : vector<8x256xf32> to vector<8x128xf32>
    %cst_33 = arith.constant 0.000000e+00 : f32
    %56 = vector.broadcast %cst_33 : f32 to vector<8x128xf32>
    %57 = arith.maximumf %55, %56 : vector<8x128xf32>
    %58 = arith.mulf %54, %57 : vector<8x128xf32>
    %cst_34 = arith.constant 1.000000e+00 : f32
    %59 = vector.broadcast %cst_34 : f32 to vector<8x128xf32>
    %60 = arith.subf %59, %54 : vector<8x128xf32>
    %61 = arith.mulf %60, %40 : vector<8x128xf32>
    %62 = arith.addf %58, %61 : vector<8x128xf32>
    %c0_35 = arith.constant 0 : index
    %c0_36 = arith.constant 0 : index
    %63 = vector.load %arg9[%c0_35, %c0_36] : memref<8x128xf32, #tpu.memory_space<vmem>>, vector<8x128xf32>
    tpu.vector_store %arg9[%c0_35, %c0_36], %62 {strides = array<i32>} : memref<8x128xf32, #tpu.memory_space<vmem>>, vector<8x128xf32>,
    return
  }
  func.func @transform_0(%arg0: i32) -> (i32, i32, i32) {
    %c0_i32 = arith.constant 0 : i32
    %c0_i32_0 = arith.constant 0 : i32
    %c0_i32_1 = arith.constant 0 : i32
    return %arg0, %c0_i32, %c0_i32_0 : i32, i32, i32
  }
  func.func @transform_1(%arg0: i32) -> (i32, i32) {
    %c0_i32 = arith.constant 0 : i32
    %c0_i32_0 = arith.constant 0 : i32
    return %arg0, %c0_i32 : i32, i32
  }
  func.func @transform_2(%arg0: i32) -> (i32, i32) {
    %c0_i32 = arith.constant 0 : i32
    %c0_i32_0 = arith.constant 0 : i32
    %c0_i32_1 = arith.constant 0 : i32
    return %c0_i32, %c0_i32_0 : i32, i32
  }
  func.func @transform_3(%arg0: i32) -> (i32, i32) {
    %c0_i32 = arith.constant 0 : i32
    %c0_i32_0 = arith.constant 0 : i32
    %c0_i32_1 = arith.constant 0 : i32
    return %c0_i32, %c0_i32_0 : i32, i32
  }
  func.func @transform_4(%arg0: i32) -> (i32, i32) {
    %c0_i32 = arith.constant 0 : i32
    %c0_i32_0 = arith.constant 0 : i32
    %c0_i32_1 = arith.constant 0 : i32
    return %c0_i32, %c0_i32_0 : i32, i32
  }
  func.func @transform_5(%arg0: i32) -> (i32, i32) {
    %c0_i32 = arith.constant 0 : i32
    %c0_i32_0 = arith.constant 0 : i32
    %c0_i32_1 = arith.constant 0 : i32
    return %c0_i32, %c0_i32_0 : i32, i32
  }
  func.func @transform_6(%arg0: i32) -> (i32, i32, i32) {
    %c0_i32 = arith.constant 0 : i32
    %c0_i32_0 = arith.constant 0 : i32
    %c0_i32_1 = arith.constant 0 : i32
    %c0_i32_2 = arith.constant 0 : i32
    return %c0_i32, %c0_i32_0, %c0_i32_1 : i32, i32, i32
  }
  func.func @transform_7(%arg0: i32) -> (i32, i32, i32) {
    %c0_i32 = arith.constant 0 : i32
    %c0_i32_0 = arith.constant 0 : i32
    %c0_i32_1 = arith.constant 0 : i32
    %c0_i32_2 = arith.constant 0 : i32
    return %c0_i32, %c0_i32_0, %c0_i32_1 : i32, i32, i32
  }
  func.func @transform_8(%arg0: i32) -> (i32, i32) {
    %c0_i32 = arith.constant 0 : i32
    %c0_i32_0 = arith.constant 0 : i32
    return %arg0, %c0_i32 : i32, i32
  }
}

</mosaic_0001>

<llo_original>
// kernel: qanet_embedding.1
$region0: #{qanet_embedding.1}
  #allocation0 [shape = 'u32[]', space=smem, size = 0x4, offset = 0x4, fixed_abs, tag = 'smem constant byte address 0x4 - core index']
  #allocation1 [shape = 'u32[72,128]{1,0:T(1,128)}', space=vmem, size = 0x9000, scoped, tag = 'internal scratch']
  %s0 = inlined_call_operand.vmem [shape: bf16[16,16,128], index: 0, kind: input, shape index: {}]
  %s1 = inlined_call_operand.vmem [shape: f32[16,48], index: 1, kind: input, shape index: {}]
  %s2 = inlined_call_operand.vmem [shape: bf16[128,128], index: 2, kind: input, shape index: {}]
  %s3 = inlined_call_operand.vmem [shape: f32[1,128], index: 3, kind: input, shape index: {}]
  %s4 = inlined_call_operand.vmem [shape: bf16[128,128], index: 4, kind: input, shape index: {}]
  %s5 = inlined_call_operand.vmem [shape: bf16[48,128], index: 5, kind: input, shape index: {}]
  %s6 = inlined_call_operand.vmem [shape: bf16[2,128,256], index: 6, kind: input, shape index: {}]
  %s7 = inlined_call_operand.vmem [shape: f32[2,1,256], index: 7, kind: input, shape index: {}]
  %s8 = inlined_call_operand.vmem [shape: f32[16,128], index: 8, kind: output, shape index: {}]
  %s9 = sld [smem:[#allocation0]]
  $region65: #{qanet_embedding.1} parent=0
    _
  %s11 = ssub.s32 1, %s9
  %s12 = scalar_select 0, %s11, %s9
  loop: start=0, step=1, limit=4
  $region2: #{qanet_embedding.1} parent=0 // loop_pre_header
    _
  $region3: #{qanet_embedding.1} parent=0 // loop_header
    %s14 = sphi 0, %s18
    %p15 = scmp.ge.s32.totalorder %s14, 4
    %s24 = sphi 0, %s26
    %s27 = sphi 0, %s24
    %s28 = sphi 0, %s27
    %s44 = sphi 0, %s28
    %s50 = sphi 0, %s52
    %s53 = sphi 0, %s50
    %s54 = sphi 0, %s53
    %s70 = sphi 0, %s54
    %s74 = sphi 0, %s74
    %s76 = sphi 0, %s74
    %s77 = sphi 0, %s76
    %s91 = sphi 0, %s77
    %s95 = sphi 0, %s95
    %s97 = sphi 0, %s95
    %s98 = sphi 0, %s97
    %s112 = sphi 0, %s98
    %s116 = sphi 0, %s116
    %s118 = sphi 0, %s116
    %s119 = sphi 0, %s118
    %s133 = sphi 0, %s119
    %s137 = sphi 0, %s137
    %s139 = sphi 0, %s137
    %s140 = sphi 0, %s139
    %s154 = sphi 0, %s140
    %s158 = sphi 0, %s158
    %s160 = sphi 0, %s158
    %s161 = sphi 0, %s160
    %s175 = sphi 0, %s161
    %s179 = sphi 0, %s179
    %s181 = sphi 0, %s179
    %s182 = sphi 0, %s181
    %s196 = sphi 0, %s182
    %s202 = sphi 0, %s204
    %s205 = sphi 0, %s202
    %s206 = sphi 0, %s205
    %s222 = sphi 0, %s206
  $region4: #{qanet_embedding.1} parent=0 // loop_header_branch
    %17 = sbr.rel (%p15) target = $region8
  $region5: #{qanet_embedding.1} parent=0 // loop_body
    %s19 = ssub.s32 %s14, 1
    %s20 = ssub.s32 %s14, 2
    %s21 = sadd.s32 %s14, 1
    %s22 = ssub.s32 %s14, %s21
    %p23 = scmp.eq.s32.totalorder %s22, 0
    %s25 = sadd.s32 %s24, 1
    %s26 = scalar_select %p23, %s24, %s25
    %p29 = pneg %p23
    %p30 = scmp.eq.s32.totalorder %s14, 1
    %p31 = por %p29, %p30
    %p32 = scmp.ne.s32.totalorder %s24, %s27
    %p33 = scmp.eq.s32.totalorder %s14, 0
    %p34 = por %p32, %p33
    %p35 = scmp.ne.s32.totalorder %s24, %s27
    %p36 = scmp.eq.s32.totalorder %s19, 1
    %p37 = por %p35, %p36
    %p38 = scmp.ne.s32.totalorder %s27, %s28
    %p39 = scmp.eq.s32.totalorder %s19, 0
    %p40 = por %p38, %p39
    %p41 = scmp.ne.s32.totalorder %s27, %s28
    %p42 = scmp.eq.s32.totalorder %s20, 1
    %p43 = por %p41, %p42
    %p45 = scmp.ne.s32.totalorder %s28, %s44
    %p46 = scmp.eq.s32.totalorder %s20, 0
    %p47 = por %p45, %p46
    %s48 = ssub.s32 %s14, %s21
    %p49 = scmp.eq.s32.totalorder %s48, 0
    %s51 = sadd.s32 %s50, 1
    %s52 = scalar_select %p49, %s50, %s51
    %p55 = pneg %p49
    %p56 = scmp.eq.s32.totalorder %s14, 1
    %p57 = por %p55, %p56
    %p58 = scmp.ne.s32.totalorder %s50, %s53
    %p59 = scmp.eq.s32.totalorder %s14, 0
    %p60 = por %p58, %p59
    %p61 = scmp.ne.s32.totalorder %s50, %s53
    %p62 = scmp.eq.s32.totalorder %s19, 1
    %p63 = por %p61, %p62
    %p64 = scmp.ne.s32.totalorder %s53, %s54
    %p65 = scmp.eq.s32.totalorder %s19, 0
    %p66 = por %p64, %p65
    %p67 = scmp.ne.s32.totalorder %s53, %s54
    %p68 = scmp.eq.s32.totalorder %s20, 1
    %p69 = por %p67, %p68
    %p71 = scmp.ne.s32.totalorder %s54, %s70
    %p72 = scmp.eq.s32.totalorder %s20, 0
    %p73 = por %p71, %p72
    %s75 = sadd.s32 %s74, 1
    %p78 = scmp.eq.s32.totalorder %s14, 1
    %p79 = scmp.ne.s32.totalorder %s74, %s76
    %p80 = scmp.eq.s32.totalorder %s14, 0
    %p81 = por %p79, %p80
    %p82 = scmp.ne.s32.totalorder %s74, %s76
    %p83 = scmp.eq.s32.totalorder %s19, 1
    %p84 = por %p82, %p83
    %p85 = scmp.ne.s32.totalorder %s76, %s77
    %p86 = scmp.eq.s32.totalorder %s19, 0
    %p87 = por %p85, %p86
    %p88 = scmp.ne.s32.totalorder %s76, %s77
    %p89 = scmp.eq.s32.totalorder %s20, 1
    %p90 = por %p88, %p89
    %p92 = scmp.ne.s32.totalorder %s77, %s91
    %p93 = scmp.eq.s32.totalorder %s20, 0
    %p94 = por %p92, %p93
    %s96 = sadd.s32 %s95, 1
    %p99 = scmp.eq.s32.totalorder %s14, 1
    %p100 = scmp.ne.s32.totalorder %s95, %s97
    %p101 = scmp.eq.s32.totalorder %s14, 0
    %p102 = por %p100, %p101
    %p103 = scmp.ne.s32.totalorder %s95, %s97
    %p104 = scmp.eq.s32.totalorder %s19, 1
    %p105 = por %p103, %p104
    %p106 = scmp.ne.s32.totalorder %s97, %s98
    %p107 = scmp.eq.s32.totalorder %s19, 0
    %p108 = por %p106, %p107
    %p109 = scmp.ne.s32.totalorder %s97, %s98
    %p110 = scmp.eq.s32.totalorder %s20, 1
    %p111 = por %p109, %p110
    %p113 = scmp.ne.s32.totalorder %s98, %s112
    %p114 = scmp.eq.s32.totalorder %s20, 0
    %p115 = por %p113, %p114
    %s117 = sadd.s32 %s116, 1
    %p120 = scmp.eq.s32.totalorder %s14, 1
    %p121 = scmp.ne.s32.totalorder %s116, %s118
    %p122 = scmp.eq.s32.totalorder %s14, 0
    %p123 = por %p121, %p122
    %p124 = scmp.ne.s32.totalorder %s116, %s118
    %p125 = scmp.eq.s32.totalorder %s19, 1
    %p126 = por %p124, %p125
    %p127 = scmp.ne.s32.totalorder %s118, %s119
    %p128 = scmp.eq.s32.totalorder %s19, 0
    %p129 = por %p127, %p128
    %p130 = scmp.ne.s32.totalorder %s118, %s119
    %p131 = scmp.eq.s32.totalorder %s20, 1
    %p132 = por %p130, %p131
    %p134 = scmp.ne.s32.totalorder %s119, %s133
    %p135 = scmp.eq.s32.totalorder %s20, 0
    %p136 = por %p134, %p135
    %s138 = sadd.s32 %s137, 1
    %p141 = scmp.eq.s32.totalorder %s14, 1
    %p142 = scmp.ne.s32.totalorder %s137, %s139
    %p143 = scmp.eq.s32.totalorder %s14, 0
    %p144 = por %p142, %p143
    %p145 = scmp.ne.s32.totalorder %s137, %s139
    %p146 = scmp.eq.s32.totalorder %s19, 1
    %p147 = por %p145, %p146
    %p148 = scmp.ne.s32.totalorder %s139, %s140
    %p149 = scmp.eq.s32.totalorder %s19, 0
    %p150 = por %p148, %p149
    %p151 = scmp.ne.s32.totalorder %s139, %s140
    %p152 = scmp.eq.s32.totalorder %s20, 1
    %p153 = por %p151, %p152
    %p155 = scmp.ne.s32.totalorder %s140, %s154
    %p156 = scmp.eq.s32.totalorder %s20, 0
    %p157 = por %p155, %p156
    %s159 = sadd.s32 %s158, 1
    %p162 = scmp.eq.s32.totalorder %s14, 1
    %p163 = scmp.ne.s32.totalorder %s158, %s160
    %p164 = scmp.eq.s32.totalorder %s14, 0
    %p165 = por %p163, %p164
    %p166 = scmp.ne.s32.totalorder %s158, %s160
    %p167 = scmp.eq.s32.totalorder %s19, 1
    %p168 = por %p166, %p167
    %p169 = scmp.ne.s32.totalorder %s160, %s161
    %p170 = scmp.eq.s32.totalorder %s19, 0
    %p171 = por %p169, %p170
    %p172 = scmp.ne.s32.totalorder %s160, %s161
    %p173 = scmp.eq.s32.totalorder %s20, 1
    %p174 = por %p172, %p173
    %p176 = scmp.ne.s32.totalorder %s161, %s175
    %p177 = scmp.eq.s32.totalorder %s20, 0
    %p178 = por %p176, %p177
    %s180 = sadd.s32 %s179, 1
    %p183 = scmp.eq.s32.totalorder %s14, 1
    %p184 = scmp.ne.s32.totalorder %s179, %s181
    %p185 = scmp.eq.s32.totalorder %s14, 0
    %p186 = por %p184, %p185
    %p187 = scmp.ne.s32.totalorder %s179, %s181
    %p188 = scmp.eq.s32.totalorder %s19, 1
    %p189 = por %p187, %p188
    %p190 = scmp.ne.s32.totalorder %s181, %s182
    %p191 = scmp.eq.s32.totalorder %s19, 0
    %p192 = por %p190, %p191
    %p193 = scmp.ne.s32.totalorder %s181, %s182
    %p194 = scmp.eq.s32.totalorder %s20, 1
    %p195 = por %p193, %p194
    %p197 = scmp.ne.s32.totalorder %s182, %s196
    %p198 = scmp.eq.s32.totalorder %s20, 0
    %p199 = por %p197, %p198
    %s200 = ssub.s32 %s14, %s21
    %p201 = scmp.eq.s32.totalorder %s200, 0
    %s203 = sadd.s32 %s202, 1
    %s204 = scalar_select %p201, %s202, %s203
    %p207 = pneg %p201
    %p208 = scmp.eq.s32.totalorder %s14, 1
    %p209 = por %p207, %p208
    %p210 = scmp.ne.s32.totalorder %s202, %s205
    %p211 = scmp.eq.s32.totalorder %s14, 0
    %p212 = por %p210, %p211
    %p213 = scmp.ne.s32.totalorder %s202, %s205
    %p214 = scmp.eq.s32.totalorder %s19, 1
    %p215 = por %p213, %p214
    %p216 = scmp.ne.s32.totalorder %s205, %s206
    %p217 = scmp.eq.s32.totalorder %s19, 0
    %p218 = por %p216, %p217
    %p219 = scmp.ne.s32.totalorder %s205, %s206
    %p220 = scmp.eq.s32.totalorder %s20, 1
    %p221 = por %p219, %p220
    %p223 = scmp.ne.s32.totalorder %s206, %s222
    %p224 = scmp.eq.s32.totalorder %s20, 0
    %p225 = por %p223, %p224
    %p226 = scmp.le.s32.totalorder 1, %s14
    %p227 = scmp.lt.s32.totalorder %s14, 3
    %p228 = pnand %p226, %p227
    %p229 = pneg %p228
    // Predicated region
    $region9: #{qanet_embedding.1} parent=5 // pred_check
      _
    $region10: #{qanet_embedding.1} parent=5 // pred_check_branch
      %231 = sbr.rel (%p228) target = $region12
    $region11: #{qanet_embedding.1} parent=5 // pred_region
      %s232 = ssub.s32 %s14, 1
      // Predicated region
      $region13: #{qanet_embedding.1} parent=11 // pred_check
        %p233 = pneg %p87
      $region14: #{qanet_embedding.1} parent=11 // pred_check_branch
        %235 = sbr.rel (%p233) target = $region16
      $region15: #{qanet_embedding.1} parent=11 // pred_region
        _
      $region16: #{qanet_embedding.1} parent=11 // pred_fallthru
        _
      // Predicated region
      $region17: #{qanet_embedding.1} parent=11 // pred_check
        %p236 = pneg %p108
      $region18: #{qanet_embedding.1} parent=11 // pred_check_branch
        %238 = sbr.rel (%p236) target = $region20
      $region19: #{qanet_embedding.1} parent=11 // pred_region
        _
      $region20: #{qanet_embedding.1} parent=11 // pred_fallthru
        _
      // Predicated region
      $region21: #{qanet_embedding.1} parent=11 // pred_check
        %p239 = pneg %p129
      $region22: #{qanet_embedding.1} parent=11 // pred_check_branch
        %241 = sbr.rel (%p239) target = $region24
      $region23: #{qanet_embedding.1} parent=11 // pred_region
        _
      $region24: #{qanet_embedding.1} parent=11 // pred_fallthru
        _
      // Predicated region
      $region25: #{qanet_embedding.1} parent=11 // pred_check
        %p242 = pneg %p150
      $region26: #{qanet_embedding.1} parent=11 // pred_check_branch
        %244 = sbr.rel (%p242) target = $region28
      $region27: #{qanet_embedding.1} parent=11 // pred_region
        _
      $region28: #{qanet_embedding.1} parent=11 // pred_fallthru
        _
      // Predicated region
      $region29: #{qanet_embedding.1} parent=11 // pred_check
        %p245 = pneg %p171
      $region30: #{qanet_embedding.1} parent=11 // pred_check_branch
        %247 = sbr.rel (%p245) target = $region32
      $region31: #{qanet_embedding.1} parent=11 // pred_region
        _
      $region32: #{qanet_embedding.1} parent=11 // pred_fallthru
        _
      // Predicated region
      $region33: #{qanet_embedding.1} parent=11 // pred_check
        %p248 = pneg %p192
      $region34: #{qanet_embedding.1} parent=11 // pred_check_branch
        %250 = sbr.rel (%p248) target = $region36
      $region35: #{qanet_embedding.1} parent=11 // pred_region
        _
      $region36: #{qanet_embedding.1} parent=11 // pred_fallthru
        _
    $region12: #{qanet_embedding.1} parent=5 // pred_fallthru
      _
    %p251 = scmp.lt.s32.totalorder %s14, 2
    // Predicated region
    $region37: #{qanet_embedding.1} parent=5 // pred_check
      %p252 = pneg %p251
    $region38: #{qanet_embedding.1} parent=5 // pred_check_branch
      %254 = sbr.rel (%p252) target = $region40
    $region39: #{qanet_embedding.1} parent=5 // pred_region
      // Predicated region
      $region41: #{qanet_embedding.1} parent=39 // pred_check
        %p255 = pneg %p34
      $region42: #{qanet_embedding.1} parent=39 // pred_check_branch
        %257 = sbr.rel (%p255) target = $region44
      $region43: #{qanet_embedding.1} parent=39 // pred_region
        %s258 = smul.u32 8, %s14
        %p259 = scmp.lt.s32.totalorder %s258, 15
        %s260 = scalar_select %p259, %s258, 15
        %s261 = smul.addr %s260, 2
        %s262 = smul.addr %s261, 4
        %s263 = scalar_lea.vmem %s0, %s262
        %s264 = smul.u32 8, %s14
      $region44: #{qanet_embedding.1} parent=39 // pred_fallthru
        _
      // Predicated region
      $region45: #{qanet_embedding.1} parent=39 // pred_check
        %p265 = pneg %p60
      $region46: #{qanet_embedding.1} parent=39 // pred_check_branch
        %267 = sbr.rel (%p265) target = $region48
      $region47: #{qanet_embedding.1} parent=39 // pred_region
        %p268 = scmp.lt.s32.totalorder %s14, 1
        %s269 = scalar_select %p268, %s14, 1
        %s270 = smul.addr %s269, 8
        %s271 = scalar_lea.vmem %s1, %s270
      $region48: #{qanet_embedding.1} parent=39 // pred_fallthru
        _
    $region40: #{qanet_embedding.1} parent=5 // pred_fallthru
      _
    %p272 = scmp.le.s32.totalorder 1, %s14
    %p273 = scmp.lt.s32.totalorder %s14, 3
    %p274 = pnand %p272, %p273
    %p275 = pneg %p274
    // Predicated region
    $region49: #{qanet_embedding.1} parent=5 // pred_check
      _
    $region50: #{qanet_embedding.1} parent=5 // pred_check_branch
      %277 = sbr.rel (%p274) target = $region52
    $region51: #{qanet_embedding.1} parent=5 // pred_region
      %s278 = ssub.s32 %s14, 1
      %s279 = smul.u32 8, %s19
      %p280 = scmp.lt.s32.totalorder %s279, 15
      %s281 = scalar_select %p280, %s279, 15
      %s282 = smul.addr %s281, 2
      %s283 = smul.addr %s282, 4
      %s284 = scalar_lea.vmem %s0, %s283
      %p285 = pneg %p40
      %p286 = pneg %p37
      %p287 = scmp.lt.s32.totalorder %s19, 1
      %s288 = scalar_select %p287, %s19, 1
      %s289 = smul.addr %s288, 8
      %s290 = scalar_lea.vmem %s1, %s289
      %p291 = pneg %p66
      %p292 = pneg %p63
      %p293 = pneg %p87
      %p294 = pneg %p84
      %p295 = pneg %p108
      %p296 = pneg %p105
      %p297 = pneg %p129
      %p298 = pneg %p126
      %p299 = pneg %p150
      %p300 = pneg %p147
      %p301 = pneg %p171
      %p302 = pneg %p168
      %p303 = pneg %p192
      %p304 = pneg %p189
      %p305 = pneg %p218
      %p306 = pneg %p215
      %p307 = scmp.lt.s32.totalorder %s19, 1
      %s308 = scalar_select %p307, %s19, 1
      %s309 = smul.addr %s308, 8
      %s310 = scalar_lea.vmem %s8, %s309
      %s311 = smul.u32 8, %s19
      %p312 = scmp.lt.s32.totalorder %s311, 15
      %s313 = scalar_select %p312, %s311, 15
      %s314 = smul.addr %s313, 2
      %s315 = smul.addr %s314, 4
      %s316 = scalar_lea.vmem %s0, %s315
      %s317 = smul.u32 8, %s19
      %p318 = scmp.lt.s32.totalorder %s19, 1
      %s319 = scalar_select %p318, %s19, 1
      %s320 = smul.addr %s319, 8
      %s321 = scalar_lea.vmem %s1, %s320
      %p322 = scmp.lt.s32.totalorder %s19, 1
      %s323 = scalar_select %p322, %s19, 1
      %s324 = smul.addr %s323, 8
      %s325 = scalar_lea.vmem %s8, %s324
      %v327 = vld [vmem:[%s316] sm:$0xf]
      %v328 = vld [vmem:[%s316 + $0x4] sm:$0xf]
      %v329 = vld [vmem:[%s316 + $0x8] sm:$0xf]
      %v330 = vld [vmem:[%s316 + $0xc] sm:$0xf]
      %v331 = vld [vmem:[%s316 + $0x10] sm:$0xf]
      %v332 = vld [vmem:[%s316 + $0x14] sm:$0xf]
      %v333 = vld [vmem:[%s316 + $0x18] sm:$0xf]
      %v334 = vld [vmem:[%s316 + $0x1c] sm:$0xf]
      %v335 = vld [vmem:[%s316 + $0x20] sm:$0xf]
      %v336 = vld [vmem:[%s316 + $0x24] sm:$0xf]
      %v337 = vld [vmem:[%s316 + $0x28] sm:$0xf]
      %v338 = vld [vmem:[%s316 + $0x2c] sm:$0xf]
      %v339 = vld [vmem:[%s316 + $0x30] sm:$0xf]
      %v340 = vld [vmem:[%s316 + $0x34] sm:$0xf]
      %v341 = vld [vmem:[%s316 + $0x38] sm:$0xf]
      %v342 = vld [vmem:[%s316 + $0x3c] sm:$0xf]
      %v343 = vld [vmem:[%s2] sm:$0xf]
      %v344 = vld [vmem:[%s2 + $0x4] sm:$0xf]
      %v345 = vld [vmem:[%s2 + $0x8] sm:$0xf]
      %v346 = vld [vmem:[%s2 + $0xc] sm:$0xf]
      %v347 = vld [vmem:[%s2 + $0x10] sm:$0xf]
      %v348 = vld [vmem:[%s2 + $0x14] sm:$0xf]
      %v349 = vld [vmem:[%s2 + $0x18] sm:$0xf]
      %v350 = vld [vmem:[%s2 + $0x1c] sm:$0xf]
      %v351 = vld [vmem:[%s2 + $0x20] sm:$0xf]
      %v352 = vld [vmem:[%s2 + $0x24] sm:$0xf]
      %v353 = vld [vmem:[%s2 + $0x28] sm:$0xf]
      %v354 = vld [vmem:[%s2 + $0x2c] sm:$0xf]
      %v355 = vld [vmem:[%s2 + $0x30] sm:$0xf]
      %v356 = vld [vmem:[%s2 + $0x34] sm:$0xf]
      %v357 = vld [vmem:[%s2 + $0x38] sm:$0xf]
      %v358 = vld [vmem:[%s2 + $0x3c] sm:$0xf]
      %v375 = vunpack.c.l.b16 %v327
      %v376 = vunpack.c.l.b16 %v328
      %v377 = vunpack.c.l.b16 %v329
      %v378 = vunpack.c.l.b16 %v330
      %v379 = vunpack.c.l.b16 %v331
      %v380 = vunpack.c.l.b16 %v332
      %v381 = vunpack.c.l.b16 %v333
      %v382 = vunpack.c.l.b16 %v334
      %v383 = vunpack.c.l.b16 %v335
      %v384 = vunpack.c.l.b16 %v336
      %v385 = vunpack.c.l.b16 %v337
      %v386 = vunpack.c.l.b16 %v338
      %v387 = vunpack.c.l.b16 %v339
      %v388 = vunpack.c.l.b16 %v340
      %v389 = vunpack.c.l.b16 %v341
      %v390 = vunpack.c.l.b16 %v342
      %v391 = vpack.c.b16 %v376, %v375
      %v392 = vpack.c.b16 %v378, %v377
      %v393 = vpack.c.b16 %v380, %v379
      %v394 = vpack.c.b16 %v382, %v381
      %v395 = vpack.c.b16 %v384, %v383
      %v396 = vpack.c.b16 %v386, %v385
      %v397 = vpack.c.b16 %v388, %v387
      %v398 = vpack.c.b16 %v390, %v389
      %v423 = vunpack.c.l.b16 %v343
      %v424 = vunpack.c.l.b16 %v344
      %v425 = vunpack.c.l.b16 %v345
      %v426 = vunpack.c.l.b16 %v346
      %v427 = vunpack.c.l.b16 %v347
      %v428 = vunpack.c.l.b16 %v348
      %v429 = vunpack.c.l.b16 %v349
      %v430 = vunpack.c.l.b16 %v350
      %v431 = vunpack.c.l.b16 %v351
      %v432 = vunpack.c.l.b16 %v352
      %v433 = vunpack.c.l.b16 %v353
      %v434 = vunpack.c.l.b16 %v354
      %v435 = vunpack.c.l.b16 %v355
      %v436 = vunpack.c.l.b16 %v356
      %v437 = vunpack.c.l.b16 %v357
      %v438 = vunpack.c.l.b16 %v358
      %v439 = vpack.c.b16 %v424, %v423
      %v440 = vpack.c.b16 %v426, %v425
      %v441 = vpack.c.b16 %v428, %v427
      %v442 = vpack.c.b16 %v430, %v429
      %v443 = vpack.c.b16 %v432, %v431
      %v444 = vpack.c.b16 %v434, %v433
      %v445 = vpack.c.b16 %v436, %v435
      %v446 = vpack.c.b16 %v438, %v437
      %455 = vmatpush.bf16.msra.mxu0 %v446
      %456 = vmatpush.bf16.msra.mxu0 %v445
      %457 = vmatpush.bf16.msra.mxu0 %v444
      %458 = vmatpush.bf16.msra.mxu0 %v443
      %459 = vmatpush.bf16.msra.mxu0 %v442
      %460 = vmatpush.bf16.msra.mxu0 %v441
      %461 = vmatpush.bf16.msra.mxu0 %v440
      %462 = vmatpush.bf16.msra.mxu0 %v439
      %463 = vmatmul.bf16.gmra.mxu0 %v391
      %v464 = vpop.f32.mrf.mxu0
      %v465 = vadd.f32 0.0, %v464
      %v466 = vpop.f32.mrf.mxu0
      %v467 = vadd.f32 0.0, %v466
      %468 = vmatmul.bf16.gmra.mxu0 %v392
      %v469 = vpop.f32.mrf.mxu0
      %v470 = vadd.f32 0.0, %v469
      %v471 = vpop.f32.mrf.mxu0
      %v472 = vadd.f32 0.0, %v471
      %473 = vmatmul.bf16.gmra.mxu0 %v393
      %v474 = vpop.f32.mrf.mxu0
      %v475 = vadd.f32 0.0, %v474
      %v476 = vpop.f32.mrf.mxu0
      %v477 = vadd.f32 0.0, %v476
      %478 = vmatmul.bf16.gmra.mxu0 %v394
      %v479 = vpop.f32.mrf.mxu0
      %v480 = vadd.f32 0.0, %v479
      %v481 = vpop.f32.mrf.mxu0
      %v482 = vadd.f32 0.0, %v481
      %483 = vmatmul.bf16.gmra.mxu0 %v395
      %v484 = vpop.f32.mrf.mxu0
      %v485 = vadd.f32 0.0, %v484
      %v486 = vpop.f32.mrf.mxu0
      %v487 = vadd.f32 0.0, %v486
      %488 = vmatmul.bf16.gmra.mxu0 %v396
      %v489 = vpop.f32.mrf.mxu0
      %v490 = vadd.f32 0.0, %v489
      %v491 = vpop.f32.mrf.mxu0
      %v492 = vadd.f32 0.0, %v491
      %493 = vmatmul.bf16.gmra.mxu0 %v397
      %v494 = vpop.f32.mrf.mxu0
      %v495 = vadd.f32 0.0, %v494
      %v496 = vpop.f32.mrf.mxu0
      %v497 = vadd.f32 0.0, %v496
      %498 = vmatmul.bf16.gmra.mxu0 %v398
      %v499 = vpop.f32.mrf.mxu0
      %v500 = vadd.f32 0.0, %v499
      %v501 = vpop.f32.mrf.mxu0
      %v502 = vadd.f32 0.0, %v501
      %503 = vdwg.mxu0
      %v504 = vmax.f32 %v465, %v467
      %v505 = vrot.slane %v504, 4
      %v506 = vmax.f32 %v504, %v505
      %v507 = vrot.slane %v506, 2
      %v508 = vmax.f32 %v506, %v507
      %v509 = vrot.slane %v508, 1
      %v510 = vmax.f32 %v508, %v509
      %v511 = vmax.f32 %v470, %v472
      %v512 = vrot.slane %v511, 4
      %v513 = vmax.f32 %v511, %v512
      %v514 = vrot.slane %v513, 2
      %v515 = vmax.f32 %v513, %v514
      %v516 = vrot.slane %v515, 1
      %v517 = vmax.f32 %v515, %v516
      %v518 = vmax.f32 %v475, %v477
      %v519 = vrot.slane %v518, 4
      %v520 = vmax.f32 %v518, %v519
      %v521 = vrot.slane %v520, 2
      %v522 = vmax.f32 %v520, %v521
      %v523 = vrot.slane %v522, 1
      %v524 = vmax.f32 %v522, %v523
      %v525 = vmax.f32 %v480, %v482
      %v526 = vrot.slane %v525, 4
      %v527 = vmax.f32 %v525, %v526
      %v528 = vrot.slane %v527, 2
      %v529 = vmax.f32 %v527, %v528
      %v530 = vrot.slane %v529, 1
      %v531 = vmax.f32 %v529, %v530
      %v532 = vmax.f32 %v485, %v487
      %v533 = vrot.slane %v532, 4
      %v534 = vmax.f32 %v532, %v533
      %v535 = vrot.slane %v534, 2
      %v536 = vmax.f32 %v534, %v535
      %v537 = vrot.slane %v536, 1
      %v538 = vmax.f32 %v536, %v537
      %v539 = vmax.f32 %v490, %v492
      %v540 = vrot.slane %v539, 4
      %v541 = vmax.f32 %v539, %v540
      %v542 = vrot.slane %v541, 2
      %v543 = vmax.f32 %v541, %v542
      %v544 = vrot.slane %v543, 1
      %v545 = vmax.f32 %v543, %v544
      %v546 = vmax.f32 %v495, %v497
      %v547 = vrot.slane %v546, 4
      %v548 = vmax.f32 %v546, %v547
      %v549 = vrot.slane %v548, 2
      %v550 = vmax.f32 %v548, %v549
      %v551 = vrot.slane %v550, 1
      %v552 = vmax.f32 %v550, %v551
      %v553 = vmax.f32 %v500, %v502
      %v554 = vrot.slane %v553, 4
      %v555 = vmax.f32 %v553, %v554
      %v556 = vrot.slane %v555, 2
      %v557 = vmax.f32 %v555, %v556
      %v558 = vrot.slane %v557, 1
      %v559 = vmax.f32 %v557, %v558
      %v560 = vld [vmem:[%s3] sm:$0x1]
      %v562 = vperm.slane %v560, 0
      %v564 = vadd.f32 %v510, %v562
      %v565 = vadd.f32 %v517, %v562
      %v566 = vadd.f32 %v524, %v562
      %v567 = vadd.f32 %v531, %v562
      %v568 = vadd.f32 %v538, %v562
      %v569 = vadd.f32 %v545, %v562
      %v570 = vadd.f32 %v552, %v562
      %v571 = vadd.f32 %v559, %v562
      %v572 = vmax.f32 %v564, 0.0
      %v573 = vmax.f32 %v565, 0.0
      %v574 = vmax.f32 %v566, 0.0
      %v575 = vmax.f32 %v567, 0.0
      %v576 = vmax.f32 %v568, 0.0
      %v577 = vmax.f32 %v569, 0.0
      %v578 = vmax.f32 %v570, 0.0
      %v579 = vmax.f32 %v571, 0.0
      %v580 = vpack.c.bf16 %v572, %v572
      %v581 = vpack.c.bf16 %v573, %v573
      %v582 = vpack.c.bf16 %v574, %v574
      %v583 = vpack.c.bf16 %v575, %v575
      %v584 = vpack.c.bf16 %v576, %v576
      %v585 = vpack.c.bf16 %v577, %v577
      %v586 = vpack.c.bf16 %v578, %v578
      %v587 = vpack.c.bf16 %v579, %v579
      %v588 = vld [vmem:[%s4] sm:$0xf]
      %v589 = vld [vmem:[%s4 + $0x4] sm:$0xf]
      %v590 = vld [vmem:[%s4 + $0x8] sm:$0xf]
      %v591 = vld [vmem:[%s4 + $0xc] sm:$0xf]
      %v592 = vld [vmem:[%s4 + $0x10] sm:$0xf]
      %v593 = vld [vmem:[%s4 + $0x14] sm:$0xf]
      %v594 = vld [vmem:[%s4 + $0x18] sm:$0xf]
      %v595 = vld [vmem:[%s4 + $0x1c] sm:$0xf]
      %v596 = vld [vmem:[%s4 + $0x20] sm:$0xf]
      %v597 = vld [vmem:[%s4 + $0x24] sm:$0xf]
      %v598 = vld [vmem:[%s4 + $0x28] sm:$0xf]
      %v599 = vld [vmem:[%s4 + $0x2c] sm:$0xf]
      %v600 = vld [vmem:[%s4 + $0x30] sm:$0xf]
      %v601 = vld [vmem:[%s4 + $0x34] sm:$0xf]
      %v602 = vld [vmem:[%s4 + $0x38] sm:$0xf]
      %v603 = vld [vmem:[%s4 + $0x3c] sm:$0xf]
      %v604 = vld [vmem:[%s321] sm:$0xff]
      %v605 = vpack.c.bf16 %v604, %v604
      %v606 = vld [vmem:[%s5] sm:$0xf]
      %v607 = vld [vmem:[%s5 + $0x4] sm:$0xf]
      %v608 = vld [vmem:[%s5 + $0x8] sm:$0xf]
      %v609 = vld [vmem:[%s5 + $0xc] sm:$0xf]
      %v610 = vld [vmem:[%s5 + $0x10] sm:$0xf]
      %v611 = vld [vmem:[%s5 + $0x14] sm:$0xf]
      %v618 = vunpack.c.l.b16 %v606
      %v619 = vunpack.c.l.b16 %v607
      %v620 = vunpack.c.l.b16 %v608
      %v621 = vunpack.c.l.b16 %v609
      %v622 = vunpack.c.l.b16 %v610
      %v623 = vunpack.c.l.b16 %v611
      %v624 = vpack.c.b16 %v619, %v618
      %v625 = vpack.c.b16 %v621, %v620
      %v626 = vpack.c.b16 %v623, %v622
      %vm630 = vcmask 392192
      %v632 = vsel %vm630, %v605, 0
      %634 = vmatpush.bf16.msra.mxu0 0
      %635 = vmatpush.bf16.msra.mxu0 0
      %636 = vmatpush.bf16.msra.mxu0 0
      %637 = vmatpush.bf16.msra.mxu0 0
      %638 = vmatpush.bf16.msra.mxu0 0
      %639 = vmatpush.bf16.msra.mxu0 %v626
      %640 = vmatpush.bf16.msra.mxu0 %v625
      %641 = vmatpush.bf16.msra.mxu0 %v624
      %642 = vmatmul.bf16.gmra.mxu0 %v632
      %v643 = vpop.f32.mrf.mxu0
      %v644 = vadd.f32 0.0, %v643
      %v645 = vpop.f32.mrf.mxu0
      %646 = vdwg.mxu0
      %v655 = vunpack.c.l.b16 %v580
      %v656 = vunpack.c.l.b16 %v581
      %v657 = vunpack.c.l.b16 %v582
      %v658 = vunpack.c.l.b16 %v583
      %v659 = vunpack.c.l.b16 %v584
      %v660 = vunpack.c.l.b16 %v585
      %v661 = vunpack.c.l.b16 %v586
      %v662 = vunpack.c.l.b16 %v587
      %v663 = vrot.slane %v656, 7
      %vm664 = vcmask 1041409
      %v665 = vsel %vm664, %v663, %v655
      %v666 = vrot.slane %v657, 6
      %vm667 = vcmask 1042434
      %v668 = vsel %vm667, %v666, %v665
      %v669 = vrot.slane %v658, 5
      %vm670 = vcmask 1043459
      %v671 = vsel %vm670, %v669, %v668
      %v672 = vrot.slane %v659, 4
      %vm673 = vcmask 1044484
      %v674 = vsel %vm673, %v672, %v671
      %v675 = vrot.slane %v660, 3
      %vm676 = vcmask 1045509
      %v677 = vsel %vm676, %v675, %v674
      %v678 = vrot.slane %v661, 2
      %vm679 = vcmask 1046534
      %v680 = vsel %vm679, %v678, %v677
      %v681 = vrot.slane %v662, 1
      %vm682 = vcmask 1047559
      %v683 = vsel %vm682, %v681, %v680
      %v684 = vpack.c.b16 %v683, %v683
      %v702 = vunpack.c.l.b16 %v588
      %v703 = vunpack.c.l.b16 %v589
      %v704 = vunpack.c.l.b16 %v590
      %v705 = vunpack.c.l.b16 %v591
      %v706 = vunpack.c.l.b16 %v592
      %v707 = vunpack.c.l.b16 %v593
      %v708 = vunpack.c.l.b16 %v594
      %v709 = vunpack.c.l.b16 %v595
      %v710 = vunpack.c.l.b16 %v596
      %v711 = vunpack.c.l.b16 %v597
      %v712 = vunpack.c.l.b16 %v598
      %v713 = vunpack.c.l.b16 %v599
      %v714 = vunpack.c.l.b16 %v600
      %v715 = vunpack.c.l.b16 %v601
      %v716 = vunpack.c.l.b16 %v602
      %v717 = vunpack.c.l.b16 %v603
      %v718 = vpack.c.b16 %v703, %v702
      %v719 = vpack.c.b16 %v705, %v704
      %v720 = vpack.c.b16 %v707, %v706
      %v721 = vpack.c.b16 %v709, %v708
      %v722 = vpack.c.b16 %v711, %v710
      %v723 = vpack.c.b16 %v713, %v712
      %v724 = vpack.c.b16 %v715, %v714
      %v725 = vpack.c.b16 %v717, %v716
      %734 = vmatpush.bf16.msra.mxu0 %v725
      %735 = vmatpush.bf16.msra.mxu0 %v724
      %736 = vmatpush.bf16.msra.mxu0 %v723
      %737 = vmatpush.bf16.msra.mxu0 %v722
      %738 = vmatpush.bf16.msra.mxu0 %v721
      %739 = vmatpush.bf16.msra.mxu0 %v720
      %740 = vmatpush.bf16.msra.mxu0 %v719
      %741 = vmatpush.bf16.msra.mxu0 %v718
      %742 = vmatmul.bf16.gmra.mxu0 %v684
      %v743 = vpop.f32.mrf.mxu0
      %v744 = vadd.f32 %v644, %v743
      %v745 = vpop.f32.mrf.mxu0
      %746 = vdwg.mxu0
      %v747 = vpack.c.bf16 %v744, %v744
      %v748 = vld [vmem:[%s6] sm:$0xff]
      %v749 = vld [vmem:[%s6 + $0x8] sm:$0xff]
      %v750 = vld [vmem:[%s6 + $0x10] sm:$0xff]
      %v751 = vld [vmem:[%s6 + $0x18] sm:$0xff]
      %v752 = vld [vmem:[%s6 + $0x20] sm:$0xff]
      %v753 = vld [vmem:[%s6 + $0x28] sm:$0xff]
      %v754 = vld [vmem:[%s6 + $0x30] sm:$0xff]
      %v755 = vld [vmem:[%s6 + $0x38] sm:$0xff]
      %v756 = vld [vmem:[%s6 + $0x40] sm:$0xff]
      %v757 = vld [vmem:[%s6 + $0x48] sm:$0xff]
      %v758 = vld [vmem:[%s6 + $0x50] sm:$0xff]
      %v759 = vld [vmem:[%s6 + $0x58] sm:$0xff]
      %v760 = vld [vmem:[%s6 + $0x60] sm:$0xff]
      %v761 = vld [vmem:[%s6 + $0x68] sm:$0xff]
      %v762 = vld [vmem:[%s6 + $0x70] sm:$0xff]
      %v763 = vld [vmem:[%s6 + $0x78] sm:$0xff]
      %v764 = vld [vmem:[%s7] sm:$0x3]
      %v766 = vperm.slane %v764, 0
      %v767 = vperm.slane %v764, 1
      %v786 = vunpack.c.l.b16 %v748
      %v787 = vunpack.c.h.b16 %v748
      %v788 = vunpack.c.l.b16 %v749
      %v789 = vunpack.c.h.b16 %v749
      %v790 = vunpack.c.l.b16 %v750
      %v791 = vunpack.c.h.b16 %v750
      %v792 = vunpack.c.l.b16 %v751
      %v793 = vunpack.c.h.b16 %v751
      %v794 = vunpack.c.l.b16 %v752
      %v795 = vunpack.c.h.b16 %v752
      %v796 = vunpack.c.l.b16 %v753
      %v797 = vunpack.c.h.b16 %v753
      %v798 = vunpack.c.l.b16 %v754
      %v799 = vunpack.c.h.b16 %v754
      %v800 = vunpack.c.l.b16 %v755
      %v801 = vunpack.c.h.b16 %v755
      %v802 = vunpack.c.l.b16 %v756
      %v803 = vunpack.c.h.b16 %v756
      %v804 = vunpack.c.l.b16 %v757
      %v805 = vunpack.c.h.b16 %v757
      %v806 = vunpack.c.l.b16 %v758
      %v807 = vunpack.c.h.b16 %v758
      %v808 = vunpack.c.l.b16 %v759
      %v809 = vunpack.c.h.b16 %v759
      %v810 = vunpack.c.l.b16 %v760
      %v811 = vunpack.c.h.b16 %v760
      %v812 = vunpack.c.l.b16 %v761
      %v813 = vunpack.c.h.b16 %v761
      %v814 = vunpack.c.l.b16 %v762
      %v815 = vunpack.c.h.b16 %v762
      %v816 = vunpack.c.l.b16 %v763
      %v817 = vunpack.c.h.b16 %v763
      %v818 = vpack.c.b16 %v788, %v786
      %v819 = vpack.c.b16 %v789, %v787
      %v820 = vpack.c.b16 %v792, %v790
      %v821 = vpack.c.b16 %v793, %v791
      %v822 = vpack.c.b16 %v796, %v794
      %v823 = vpack.c.b16 %v797, %v795
      %v824 = vpack.c.b16 %v800, %v798
      %v825 = vpack.c.b16 %v801, %v799
      %v826 = vpack.c.b16 %v804, %v802
      %v827 = vpack.c.b16 %v805, %v803
      %v828 = vpack.c.b16 %v808, %v806
      %v829 = vpack.c.b16 %v809, %v807
      %v830 = vpack.c.b16 %v812, %v810
      %v831 = vpack.c.b16 %v813, %v811
      %v832 = vpack.c.b16 %v816, %v814
      %v833 = vpack.c.b16 %v817, %v815
      %850 = vmatpush.bf16.msra.mxu0 %v832
      %851 = vmatpush.bf16.msra.mxu0 %v830
      %852 = vmatpush.bf16.msra.mxu0 %v828
      %853 = vmatpush.bf16.msra.mxu0 %v826
      %854 = vmatpush.bf16.msra.mxu0 %v824
      %855 = vmatpush.bf16.msra.mxu0 %v822
      %856 = vmatpush.bf16.msra.mxu0 %v820
      %857 = vmatpush.bf16.msra.mxu0 %v818
      %858 = vmatmul.bf16.gmra.mxu0 %v747
      %v859 = vpop.f32.mrf.mxu0
      %v860 = vadd.f32 %v766, %v859
      %v861 = vpop.f32.mrf.mxu0
      %862 = vdwg.mxu0
      %863 = vmatpush.bf16.msra.mxu0 %v833
      %864 = vmatpush.bf16.msra.mxu0 %v831
      %865 = vmatpush.bf16.msra.mxu0 %v829
      %866 = vmatpush.bf16.msra.mxu0 %v827
      %867 = vmatpush.bf16.msra.mxu0 %v825
      %868 = vmatpush.bf16.msra.mxu0 %v823
      %869 = vmatpush.bf16.msra.mxu0 %v821
      %870 = vmatpush.bf16.msra.mxu0 %v819
      %871 = vmatmul.bf16.gmra.mxu0 %v747
      %v872 = vpop.f32.mrf.mxu0
      %v873 = vadd.f32 %v767, %v872
      %v874 = vpop.f32.mrf.mxu0
      %875 = vdwg.mxu0
      %v876 = vxor.u32 %v860, 2147483648
      %v877 = vmul.f32 %v876, 1.442695
      %v878 = vpow.pop %v877
      %v879 = vadd.f32 %v878, 1.0
      %v880 = vrcp.pop %v879
      %v881 = vmul.f32 %v879, %v880
      %v882 = vsub.f32 1.0, %v881
      %v883 = vmul.f32 %v880, %v882
      %v884 = vadd.f32 %v880, %v883
      %vm885 = vweird.f32 %v879
      %vm886 = vweird.f32 %v880
      %vm887 = vmor %vm885, %vm886
      %v888 = vsel %vm887, %v880, %v884
      %v889 = vand.u32 2147483647, %v879
      %vm890 = vcmp.eq.f32.partialorder %v889, 8.507059e+37
      %v891 = vand.u32 %v879, 2147483648
      %v892 = vor.u32 1.1754944e-38, %v891
      %v893 = vsel %vm890, %v892, %v888
      %v894 = vmul.f32 1.0, %v893
      %v895 = vmax.f32 %v873, 0.0
      %v896 = vmul.f32 %v894, %v895
      %v897 = vsub.f32 1.0, %v894
      %v898 = vmul.f32 %v897, %v744
      %v899 = vadd.f32 %v896, %v898
      %v900 = vpack.c.bf16 %v899, %v899
      %s901 = scalar_lea.vmem %s6, 128
      %v902 = vld [vmem:[%s901] sm:$0xff]
      %v903 = vld [vmem:[%s901 + $0x8] sm:$0xff]
      %v904 = vld [vmem:[%s901 + $0x10] sm:$0xff]
      %v905 = vld [vmem:[%s901 + $0x18] sm:$0xff]
      %v906 = vld [vmem:[%s901 + $0x20] sm:$0xff]
      %v907 = vld [vmem:[%s901 + $0x28] sm:$0xff]
      %v908 = vld [vmem:[%s901 + $0x30] sm:$0xff]
      %v909 = vld [vmem:[%s901 + $0x38] sm:$0xff]
      %v910 = vld [vmem:[%s901 + $0x40] sm:$0xff]
      %v911 = vld [vmem:[%s901 + $0x48] sm:$0xff]
      %v912 = vld [vmem:[%s901 + $0x50] sm:$0xff]
      %v913 = vld [vmem:[%s901 + $0x58] sm:$0xff]
      %v914 = vld [vmem:[%s901 + $0x60] sm:$0xff]
      %v915 = vld [vmem:[%s901 + $0x68] sm:$0xff]
      %v916 = vld [vmem:[%s901 + $0x70] sm:$0xff]
      %v917 = vld [vmem:[%s901 + $0x78] sm:$0xff]
      %s918 = scalar_lea.vmem %s7, 2
      %v919 = vld [vmem:[%s918] sm:$0x3]
      %v921 = vperm.slane %v919, 0
      %v922 = vperm.slane %v919, 1
      %v941 = vunpack.c.l.b16 %v902
      %v942 = vunpack.c.h.b16 %v902
      %v943 = vunpack.c.l.b16 %v903
      %v944 = vunpack.c.h.b16 %v903
      %v945 = vunpack.c.l.b16 %v904
      %v946 = vunpack.c.h.b16 %v904
      %v947 = vunpack.c.l.b16 %v905
      %v948 = vunpack.c.h.b16 %v905
      %v949 = vunpack.c.l.b16 %v906
      %v950 = vunpack.c.h.b16 %v906
      %v951 = vunpack.c.l.b16 %v907
      %v952 = vunpack.c.h.b16 %v907
      %v953 = vunpack.c.l.b16 %v908
      %v954 = vunpack.c.h.b16 %v908
      %v955 = vunpack.c.l.b16 %v909
      %v956 = vunpack.c.h.b16 %v909
      %v957 = vunpack.c.l.b16 %v910
      %v958 = vunpack.c.h.b16 %v910
      %v959 = vunpack.c.l.b16 %v911
      %v960 = vunpack.c.h.b16 %v911
      %v961 = vunpack.c.l.b16 %v912
      %v962 = vunpack.c.h.b16 %v912
      %v963 = vunpack.c.l.b16 %v913
      %v964 = vunpack.c.h.b16 %v913
      %v965 = vunpack.c.l.b16 %v914
      %v966 = vunpack.c.h.b16 %v914
      %v967 = vunpack.c.l.b16 %v915
      %v968 = vunpack.c.h.b16 %v915
      %v969 = vunpack.c.l.b16 %v916
      %v970 = vunpack.c.h.b16 %v916
      %v971 = vunpack.c.l.b16 %v917
      %v972 = vunpack.c.h.b16 %v917
      %v973 = vpack.c.b16 %v943, %v941
      %v974 = vpack.c.b16 %v944, %v942
      %v975 = vpack.c.b16 %v947, %v945
      %v976 = vpack.c.b16 %v948, %v946
      %v977 = vpack.c.b16 %v951, %v949
      %v978 = vpack.c.b16 %v952, %v950
      %v979 = vpack.c.b16 %v955, %v953
      %v980 = vpack.c.b16 %v956, %v954
      %v981 = vpack.c.b16 %v959, %v957
      %v982 = vpack.c.b16 %v960, %v958
      %v983 = vpack.c.b16 %v963, %v961
      %v984 = vpack.c.b16 %v964, %v962
      %v985 = vpack.c.b16 %v967, %v965
      %v986 = vpack.c.b16 %v968, %v966
      %v987 = vpack.c.b16 %v971, %v969
      %v988 = vpack.c.b16 %v972, %v970
      %1005 = vmatpush.bf16.msra.mxu0 %v987
      %1006 = vmatpush.bf16.msra.mxu0 %v985
      %1007 = vmatpush.bf16.msra.mxu0 %v983
      %1008 = vmatpush.bf16.msra.mxu0 %v981
      %1009 = vmatpush.bf16.msra.mxu0 %v979
      %1010 = vmatpush.bf16.msra.mxu0 %v977
      %1011 = vmatpush.bf16.msra.mxu0 %v975
      %1012 = vmatpush.bf16.msra.mxu0 %v973
      %1013 = vmatmul.bf16.gmra.mxu0 %v900
      %v1014 = vpop.f32.mrf.mxu0
      %v1015 = vadd.f32 %v921, %v1014
      %v1016 = vpop.f32.mrf.mxu0
      %1017 = vdwg.mxu0
      %1018 = vmatpush.bf16.msra.mxu0 %v988
      %1019 = vmatpush.bf16.msra.mxu0 %v986
      %1020 = vmatpush.bf16.msra.mxu0 %v984
      %1021 = vmatpush.bf16.msra.mxu0 %v982
      %1022 = vmatpush.bf16.msra.mxu0 %v980
      %1023 = vmatpush.bf16.msra.mxu0 %v978
      %1024 = vmatpush.bf16.msra.mxu0 %v976
      %1025 = vmatpush.bf16.msra.mxu0 %v974
      %1026 = vmatmul.bf16.gmra.mxu0 %v900
      %v1027 = vpop.f32.mrf.mxu0
      %v1028 = vadd.f32 %v922, %v1027
      %v1029 = vpop.f32.mrf.mxu0
      %1030 = vdwg.mxu0
      %v1031 = vxor.u32 %v1015, 2147483648
      %v1032 = vmul.f32 %v1031, 1.442695
      %v1033 = vpow.pop %v1032
      %v1034 = vadd.f32 %v1033, 1.0
      %v1035 = vrcp.pop %v1034
      %v1036 = vmul.f32 %v1034, %v1035
      %v1037 = vsub.f32 1.0, %v1036
      %v1038 = vmul.f32 %v1035, %v1037
      %v1039 = vadd.f32 %v1035, %v1038
      %vm1040 = vweird.f32 %v1034
      %vm1041 = vweird.f32 %v1035
      %vm1042 = vmor %vm1040, %vm1041
      %v1043 = vsel %vm1042, %v1035, %v1039
      %v1044 = vand.u32 2147483647, %v1034
      %vm1045 = vcmp.eq.f32.partialorder %v1044, 8.507059e+37
      %v1046 = vand.u32 %v1034, 2147483648
      %v1047 = vor.u32 1.1754944e-38, %v1046
      %v1048 = vsel %vm1045, %v1047, %v1043
      %v1049 = vmul.f32 1.0, %v1048
      %v1050 = vmax.f32 %v1028, 0.0
      %v1051 = vmul.f32 %v1049, %v1050
      %v1052 = vsub.f32 1.0, %v1049
      %v1053 = vmul.f32 %v1052, %v899
      %v1054 = vadd.f32 %v1051, %v1053
      %1055 = vst [vmem:[%s325] sm:$0xff] %v1054
      %p1056 = scmp.lt.s32.totalorder %s19, 1
      %s1057 = scalar_select %p1056, %s19, 1
      %s1058 = smul.addr %s1057, 8
      %s1059 = scalar_lea.vmem %s8, %s1058
      // Predicated region
      $region53: #{qanet_embedding.1} parent=51 // pred_check
        %p1060 = pneg %p215
      $region54: #{qanet_embedding.1} parent=51 // pred_check_branch
        %1062 = sbr.rel (%p1060) target = $region56
      $region55: #{qanet_embedding.1} parent=51 // pred_region
        _
      $region56: #{qanet_embedding.1} parent=51 // pred_fallthru
        _
    $region52: #{qanet_embedding.1} parent=5 // pred_fallthru
      _
    %p1063 = scmp.le.s32.totalorder 2, %s14
    // Predicated region
    $region57: #{qanet_embedding.1} parent=5 // pred_check
      %p1064 = pneg %p1063
    $region58: #{qanet_embedding.1} parent=5 // pred_check_branch
      %1066 = sbr.rel (%p1064) target = $region60
    $region59: #{qanet_embedding.1} parent=5 // pred_region
      %s1067 = ssub.s32 %s14, 2
      // Predicated region
      $region61: #{qanet_embedding.1} parent=59 // pred_check
        %p1068 = pneg %p221
      $region62: #{qanet_embedding.1} parent=59 // pred_check_branch
        %1070 = sbr.rel (%p1068) target = $region64
      $region63: #{qanet_embedding.1} parent=59 // pred_region
        %p1071 = scmp.lt.s32.totalorder %s20, 1
        %s1072 = scalar_select %p1071, %s20, 1
        %s1073 = smul.addr %s1072, 8
        %s1074 = scalar_lea.vmem %s8, %s1073
      $region64: #{qanet_embedding.1} parent=59 // pred_fallthru
        _
    $region60: #{qanet_embedding.1} parent=5 // pred_fallthru
      _
  $region6: #{qanet_embedding.1} parent=0 // loop_footer
    %s18 = sadd.s32 1, %s14
  $region7: #{qanet_embedding.1} parent=0 // loop_footer_branch
    %13 = sbr.rel target = $region3
  $region8: #{qanet_embedding.1} parent=0 // loop_exit
    _

</llo_original>
